<compile_context>
chip_gen: v7x
topology: tpu7x:2x2x1
jax: 0.10.0
libtpu: 0.0.40
codegen_flags: <defaults>
</compile_context>

<pallas_src>
import jax
import jax.numpy as jnp
from jax import lax
from jax.experimental import pallas as pl
from jax.experimental.pallas import tpu as pltpu


def _round_up(x: int, m: int) -> int:
    return ((x + m - 1) // m) * m


def mlp_kernel(x_ref, w1_ref, b1_ref, w2_ref, b2_ref, o_ref):
    """One batch tile of the packed MLP.

    x_ref : (R, 128)     lane 4*p + k = feature k of batch slot p of the row
    w1_ref: (128, 32*H)  block-diagonal packing of w1 (4, H)
    b1_ref: (1, 32*H)    b1 tiled once per batch slot
    w2_ref: (32*H, 96)   block-diagonal packing of w2 (H, 3)
    b2_ref: (1, 96)      b2 tiled once per batch slot
    o_ref : (R, 96)      lane 3*p + o = output o of batch slot p of the row
    """
    x = x_ref[...]
    # Layer 1 on the MXU (f32 accumulation); the zero blocks of w1g contribute
    # exactly nothing, so this matches the reference 4-term dot per output.
    h = jnp.dot(x, w1_ref[...], preferred_element_type=jnp.float32)
    h = jnp.maximum(h + b1_ref[...], 0.0)            # bias + ReLU on the VPU
    # Layer 2 on the MXU, still in the packed layout.
    y = jnp.dot(h, w2_ref[...], preferred_element_type=jnp.float32)
    o_ref[...] = (y + b2_ref[...]).astype(o_ref.dtype)


def mlp_forward(x, w1, b1, w2, b2, *, tb=None, vmem_budget_bytes=24 << 20):
    """Forward pass of Linear(4, H) -> ReLU -> Linear(H, 3).

    x : (B, 4) float32
    w1: (4, H), b1: (1, H) or (H,), w2: (H, 3), b2: (1, 3) or (3,)
    tb: optional batch-tile override (in batch elements), mainly for tests.
    Returns (B, 3) float32.
    """
    B, in_dim = x.shape
    hidden = w1.shape[1]
    out_dim = w2.shape[1]
    if 128 % in_dim != 0:
        raise ValueError("input feature width must divide the 128-lane vreg")
    grp = 128 // in_dim            # batch elements packed per row (= 32)
    sub = 8                        # sublane granularity of a packed-row block

    # ---- wrapper-side packing: free reshapes, no transposes ----------------
    b_pad = _round_up(B, grp * sub)            # multiple of 256 batch elements
    rows = b_pad // grp                        # packed rows (multiple of 8)
    x_p = x if b_pad == B else jnp.pad(x, ((0, b_pad - B), (0, 0)))
    xg = x_p.astype(jnp.float32).reshape(rows, grp * in_dim)  # (rows, 128)

    # Block-diagonal packed weights: one copy of w per batch slot in a row.
    #   w1g[in_dim*p + k, hidden*p' + j]  = w1[k, j] * (p == p')
    #   w2g[hidden*p + j, out_dim*p' + o] = w2[j, o] * (p == p')
    # (Tiny one-off cost per call; a real model would pack these at init.)
    eye = jnp.eye(grp, dtype=jnp.float32)
    w1g = jnp.kron(eye, w1.astype(jnp.float32))          # (128, grp*hidden)
    w2g = jnp.kron(eye, w2.astype(jnp.float32))          # (grp*hidden, grp*out)
    b1g = jnp.tile(b1.reshape(1, hidden).astype(jnp.float32), (1, grp))
    b2g = jnp.tile(b2.reshape(1, out_dim).astype(jnp.float32), (1, grp))

    # ---- batch-tile selection ----------------------------------------------
    # Target ~1-2 MiB of x+y HBM traffic per grid step (amortizes the
    # ~0.35us/step pipeline overhead) while double-buffered x/y tiles plus the
    # (blk_rows, grp*hidden) h temp stay inside `vmem_budget_bytes`, sized to
    # be safe on v7x (64 MiB physical VMEM) as well as v5e/v6e.
    bytes_per_row = 4 * (2 * grp * in_dim       # x tile, double buffered
                         + 2 * grp * out_dim    # y tile, double buffered
                         + 2 * grp * hidden)    # h + epilogue temporaries
    fit_rows = max(sub, (vmem_budget_bytes // bytes_per_row) // sub * sub)
    want_rows = max(sub, -(-tb // grp)) if tb is not None else 2048  # ~64K elems
    max_rows = min(fit_rows, want_rows)
    n_steps = pl.cdiv(rows, max_rows)
    # Near-even split so the (clipped) partial last block wastes < 8 rows.
    blk_rows = min(max_rows, _round_up(pl.cdiv(rows, n_steps), sub))
    grid = (pl.cdiv(rows, blk_rows),)

    cost = pl.CostEstimate(
        flops=2 * rows * grp * hidden * (grp * in_dim + grp * out_dim),
        transcendentals=0,
        bytes_accessed=4 * (rows * grp * (in_dim + out_dim)
                            + w1g.size + b1g.size + w2g.size + b2g.size),
    )

    og = pl.pallas_call(
        mlp_kernel,
        out_shape=jax.ShapeDtypeStruct((rows, grp * out_dim), jnp.float32),
        grid_spec=pltpu.PrefetchScalarGridSpec(
            num_scalar_prefetch=0,
            grid=grid,
            in_specs=[
                pl.BlockSpec((blk_rows, grp * in_dim), lambda i: (i, 0)),
                pl.BlockSpec((grp * in_dim, grp * hidden), lambda i: (0, 0)),
                pl.BlockSpec((1, grp * hidden), lambda i: (0, 0)),
                pl.BlockSpec((grp * hidden, grp * out_dim), lambda i: (0, 0)),
                pl.BlockSpec((1, grp * out_dim), lambda i: (0, 0)),
            ],
            out_specs=pl.BlockSpec((blk_rows, grp * out_dim), lambda i: (i, 0)),
        ),
        compiler_params=pltpu.CompilerParams(
            # Independent batch tiles; lets v7x shard steps across its 2 TCs.
            # (Promote to pltpu.CORE_PARALLEL if a trace shows one idle core.)
            dimension_semantics=("parallel",),
            vmem_limit_bytes=48 << 20,
        ),
        cost_estimate=cost,
    )(xg, w1g, b1g, w2g, b2g)

    y = og.reshape(b_pad, out_dim)             # free row-major reshape
    return y if b_pad == B else y[:B]


def init_params(key, in_dim=4, hidden=32, out_dim=3):
    # PyTorch-style uniform init bounds; stored as (in, out) so the forward is
    # x @ W + b (same math as nn.Linear).
    k1, k2, k3, k4 = jax.random.split(key, 4)
    bound1 = 1.0 / jnp.sqrt(in_dim)
    bound2 = 1.0 / jnp.sqrt(hidden)
    w1 = jax.random.uniform(k1, (in_dim, hidden), jnp.float32, -bound1, bound1)
    b1 = jax.random.uniform(k2, (1, hidden), jnp.float32, -bound1, bound1)
    w2 = jax.random.uniform(k3, (hidden, out_dim), jnp.float32, -bound2, bound2)
    b2 = jax.random.uniform(k4, (1, out_dim), jnp.float32, -bound2, bound2)
    return w1, b1, w2, b2


if __name__ == "__main__":
    key = jax.random.PRNGKey(0)
    kx1, kx2, kp = jax.random.split(key, 3)

    in_dim, hidden, out_dim = 4, 32, 3
    w1, b1, w2, b2 = init_params(kp, in_dim, hidden, out_dim)

    def ref_forward(xx):
        hh = jnp.maximum(
            jnp.dot(xx, w1, precision=lax.Precision.HIGHEST) + b1, 0.0)
        return jnp.dot(hh, w2, precision=lax.Precision.HIGHEST) + b2

    # Small smoke test (single grid step; exercises the batch-pad path).
    x_small = jax.random.normal(kx1, (8, in_dim), jnp.float32)
    out_small = mlp_forward(x_small, w1, b1, w2, b2)
    jax.block_until_ready(out_small)
    assert out_small.shape == (8, out_dim)
    assert jnp.allclose(out_small, ref_forward(x_small), atol=2e-5, rtol=2e-5)

    # Non-power-of-two batch with a small tile override: multiple grid steps
    # plus a clipped partial last block (the tiling/padding path the review
    # asked to be covered).
    x_big = jax.random.normal(kx2, (1234, in_dim), jnp.float32)
    out_big = mlp_forward(x_big, w1, b1, w2, b2, tb=512)
    jax.block_until_ready(out_big)
    assert out_big.shape == (1234, out_dim)
    assert jnp.allclose(out_big, ref_forward(x_big), atol=2e-5, rtol=2e-5)

    print("KERNEL_OK")
</pallas_src>

<mosaic_0001>
module attributes {stable_mosaic.version = 11 : i64} {
  func.func @mlp_kernel(%arg0: i32, %arg1: memref<8x128xf32, #tpu.memory_space<vmem>>, %arg2: memref<128x1024xf32, #tpu.memory_space<vmem>>, %arg3: memref<1x1024xf32, #tpu.memory_space<vmem>>, %arg4: memref<1024x96xf32, #tpu.memory_space<vmem>>, %arg5: memref<1x96xf32, #tpu.memory_space<vmem>>, %arg6: memref<8x96xf32, #tpu.memory_space<vmem>>) attributes {dimension_semantics = [#tpu.dimension_semantics<parallel>], iteration_bounds = array<i64: 1>, scalar_prefetch = 0 : i64, scratch_operands = 0 : i64, tpu.core_type = #tpu.core_type<tc>, window_params = [{transform_indices = @transform_0, window_bounds = array<i64: 8, 128>}, {pipeline_mode = #tpu.pipeline_mode<synchronous>, transform_indices = @transform_1, window_bounds = array<i64: 128, 1024>}, {pipeline_mode = #tpu.pipeline_mode<synchronous>, transform_indices = @transform_2, window_bounds = array<i64: 1, 1024>}, {pipeline_mode = #tpu.pipeline_mode<synchronous>, transform_indices = @transform_3, window_bounds = array<i64: 1024, 96>}, {pipeline_mode = #tpu.pipeline_mode<synchronous>, transform_indices = @transform_4, window_bounds = array<i64: 1, 96>}, {transform_indices = @transform_5, window_bounds = array<i64: 8, 96>}]} {
    %c0 = arith.constant 0 : index
    %c0_0 = arith.constant 0 : index
    %0 = vector.load %arg1[%c0, %c0_0] : memref<8x128xf32, #tpu.memory_space<vmem>>, vector<8x128xf32>
    %c0_1 = arith.constant 0 : index
    %c0_2 = arith.constant 0 : index
    %1 = vector.load %arg2[%c0_1, %c0_2] : memref<128x1024xf32, #tpu.memory_space<vmem>>, vector<128x1024xf32>
    %cst = arith.constant dense<0.000000e+00> : vector<8x1024xf32>
    %2 = tpu.matmul %0, %1, %cst {dimension_numbers = #tpu.dot_dimension_numbers<[1], [0], [0], [1], [0, 0, 1, 1], [], []>} : vector<8x128xf32>, vector<128x1024xf32>, vector<8x1024xf32> -> vector<8x1024xf32>
    %c0_3 = arith.constant 0 : index
    %c0_4 = arith.constant 0 : index
    %3 = vector.load %arg3[%c0_3, %c0_4] : memref<1x1024xf32, #tpu.memory_space<vmem>>, vector<1x1024xf32>
    %4 = vector.broadcast %3 : vector<1x1024xf32> to vector<8x1024xf32>
    %5 = arith.addf %2, %4 : vector<8x1024xf32>
    %cst_5 = arith.constant 0.000000e+00 : f32
    %6 = vector.broadcast %cst_5 : f32 to vector<8x1024xf32>
    %7 = arith.maximumf %5, %6 : vector<8x1024xf32>
    %c0_6 = arith.constant 0 : index
    %c0_7 = arith.constant 0 : index
    %8 = vector.load %arg4[%c0_6, %c0_7] : memref<1024x96xf32, #tpu.memory_space<vmem>>, vector<1024x96xf32>
    %cst_8 = arith.constant dense<0.000000e+00> : vector<8x96xf32>
    %9 = tpu.matmul %7, %8, %cst_8 {dimension_numbers = #tpu.dot_dimension_numbers<[1], [0], [0], [1], [0, 0, 1, 1], [], []>} : vector<8x1024xf32>, vector<1024x96xf32>, vector<8x96xf32> -> vector<8x96xf32>
    %c0_9 = arith.constant 0 : index
    %c0_10 = arith.constant 0 : index
    %10 = vector.load %arg5[%c0_9, %c0_10] : memref<1x96xf32, #tpu.memory_space<vmem>>, vector<1x96xf32>
    %11 = vector.broadcast %10 : vector<1x96xf32> to vector<8x96xf32>
    %12 = arith.addf %9, %11 : vector<8x96xf32>
    %c0_11 = arith.constant 0 : index
    %c0_12 = arith.constant 0 : index
    %13 = vector.load %arg6[%c0_11, %c0_12] : memref<8x96xf32, #tpu.memory_space<vmem>>, vector<8x96xf32>
    tpu.vector_store %arg6[%c0_11, %c0_12], %12 {strides = array<i32>} : memref<8x96xf32, #tpu.memory_space<vmem>>, vector<8x96xf32>,
    return
  }
  func.func @transform_0(%arg0: i32) -> (i32, i32) {
    %c0_i32 = arith.constant 0 : i32
    %c0_i32_0 = arith.constant 0 : i32
    return %arg0, %c0_i32 : i32, i32
  }
  func.func @transform_1(%arg0: i32) -> (i32, i32) {
    %c0_i32 = arith.constant 0 : i32
    %c0_i32_0 = arith.constant 0 : i32
    %c0_i32_1 = arith.constant 0 : i32
    return %c0_i32, %c0_i32_0 : i32, i32
  }
  func.func @transform_2(%arg0: i32) -> (i32, i32) {
    %c0_i32 = arith.constant 0 : i32
    %c0_i32_0 = arith.constant 0 : i32
    %c0_i32_1 = arith.constant 0 : i32
    return %c0_i32, %c0_i32_0 : i32, i32
  }
  func.func @transform_3(%arg0: i32) -> (i32, i32) {
    %c0_i32 = arith.constant 0 : i32
    %c0_i32_0 = arith.constant 0 : i32
    %c0_i32_1 = arith.constant 0 : i32
    return %c0_i32, %c0_i32_0 : i32, i32
  }
  func.func @transform_4(%arg0: i32) -> (i32, i32) {
    %c0_i32 = arith.constant 0 : i32
    %c0_i32_0 = arith.constant 0 : i32
    %c0_i32_1 = arith.constant 0 : i32
    return %c0_i32, %c0_i32_0 : i32, i32
  }
  func.func @transform_5(%arg0: i32) -> (i32, i32) {
    %c0_i32 = arith.constant 0 : i32
    %c0_i32_0 = arith.constant 0 : i32
    return %arg0, %c0_i32 : i32, i32
  }
}

</mosaic_0001>

<llo_original>
// kernel: tpu_custom_call.1
$region0: #{tpu_custom_call.1}
  #allocation0 [shape = 'u32[]', space=smem, size = 0x4, offset = 0x4, fixed_abs, tag = 'smem constant byte address 0x4 - core index']
  #allocation1 [shape = 'u32[144,128]{1,0:T(1,128)}', space=vmem, size = 0x12000, scoped, tag = 'internal scratch']
  %s0 = inlined_call_operand.vmem [shape: f32[8,128], index: 0, kind: input, shape index: {}]
  %s1 = inlined_call_operand.vmem [shape: f32[128,1024], index: 1, kind: input, shape index: {}]
  %s2 = inlined_call_operand.vmem [shape: f32[1,1024], index: 2, kind: input, shape index: {}]
  %s3 = inlined_call_operand.vmem [shape: f32[1024,96], index: 3, kind: input, shape index: {}]
  %s4 = inlined_call_operand.vmem [shape: f32[1,96], index: 4, kind: input, shape index: {}]
  %s5 = inlined_call_operand.hbm [shape: f32[8,96], index: 5, kind: output, shape index: {}]
  %s6 = sld [smem:[#allocation0]]
  $region30: #{tpu_custom_call.1} parent=0
    _
  %s8 = ssub.s32 1, %s6
  %s9 = scalar_select 0, %s8, %s6
  $region1: #{tpu_custom_call.1} parent=0
    #allocation2 [shape = 'u8[4096]{0}', space=vmem, size = 0x1000, scoped, tag = 'output window, operand 0, single buffered']
    #allocation3 [shape = 's32[1]{0}', space=sflag, size = 0x4, scoped, tag = 'scoped memory for tpu_custom_call.1']
    %10 = vsyncpa [#allocation3], 0
    // Predicated region
    $region2: #{tpu_custom_call.1} parent=1 // pred_check
      _
    $region3: #{tpu_custom_call.1} parent=1 // pred_check_branch
      %12 = sbr.rel (0) target = $region5
    $region4: #{tpu_custom_call.1} parent=1 // pred_region
      _
    $region5: #{tpu_custom_call.1} parent=1 // pred_fallthru
      _
    // Predicated region
    $region6: #{tpu_custom_call.1} parent=1 // pred_check
      _
    $region7: #{tpu_custom_call.1} parent=1 // pred_check_branch
      %14 = sbr.rel (0) target = $region9
    $region8: #{tpu_custom_call.1} parent=1 // pred_region
      _
    $region9: #{tpu_custom_call.1} parent=1 // pred_fallthru
      _
    // Predicated region
    $region10: #{tpu_custom_call.1} parent=1 // pred_check
      _
    $region11: #{tpu_custom_call.1} parent=1 // pred_check_branch
      %16 = sbr.rel (0) target = $region13
    $region12: #{tpu_custom_call.1} parent=1 // pred_region
      _
    $region13: #{tpu_custom_call.1} parent=1 // pred_fallthru
      _
    // Predicated region
    $region14: #{tpu_custom_call.1} parent=1 // pred_check
      _
    $region15: #{tpu_custom_call.1} parent=1 // pred_check_branch
      %18 = sbr.rel (0) target = $region17
    $region16: #{tpu_custom_call.1} parent=1 // pred_region
      _
    $region17: #{tpu_custom_call.1} parent=1 // pred_fallthru
      _
    // Predicated region
    $region18: #{tpu_custom_call.1} parent=1 // pred_check
      _
    $region19: #{tpu_custom_call.1} parent=1 // pred_check_branch
      %20 = sbr.rel (0) target = $region21
    $region20: #{tpu_custom_call.1} parent=1 // pred_region
      _
    $region21: #{tpu_custom_call.1} parent=1 // pred_fallthru
      _
    %v21 = vld [vmem:[%s0] sm:$0xff]
    %v22 = vld [vmem:[%s1] sm:$0xff]
    %v23 = vld [vmem:[%s1 + $0x8] sm:$0xff]
    %v24 = vld [vmem:[%s1 + $0x10] sm:$0xff]
    %v25 = vld [vmem:[%s1 + $0x18] sm:$0xff]
    %v26 = vld [vmem:[%s1 + $0x20] sm:$0xff]
    %v27 = vld [vmem:[%s1 + $0x28] sm:$0xff]
    %v28 = vld [vmem:[%s1 + $0x30] sm:$0xff]
    %v29 = vld [vmem:[%s1 + $0x38] sm:$0xff]
    %v30 = vld [vmem:[%s1 + $0x40] sm:$0xff]
    %v31 = vld [vmem:[%s1 + $0x48] sm:$0xff]
    %v32 = vld [vmem:[%s1 + $0x50] sm:$0xff]
    %v33 = vld [vmem:[%s1 + $0x58] sm:$0xff]
    %v34 = vld [vmem:[%s1 + $0x60] sm:$0xff]
    %v35 = vld [vmem:[%s1 + $0x68] sm:$0xff]
    %v36 = vld [vmem:[%s1 + $0x70] sm:$0xff]
    %v37 = vld [vmem:[%s1 + $0x78] sm:$0xff]
    %v38 = vld [vmem:[%s1 + $0x80] sm:$0xff]
    %v39 = vld [vmem:[%s1 + $0x88] sm:$0xff]
    %v40 = vld [vmem:[%s1 + $0x90] sm:$0xff]
    %v41 = vld [vmem:[%s1 + $0x98] sm:$0xff]
    %v42 = vld [vmem:[%s1 + $0xa0] sm:$0xff]
    %v43 = vld [vmem:[%s1 + $0xa8] sm:$0xff]
    %v44 = vld [vmem:[%s1 + $0xb0] sm:$0xff]
    %v45 = vld [vmem:[%s1 + $0xb8] sm:$0xff]
    %v46 = vld [vmem:[%s1 + $0xc0] sm:$0xff]
    %v47 = vld [vmem:[%s1 + $0xc8] sm:$0xff]
    %v48 = vld [vmem:[%s1 + $0xd0] sm:$0xff]
    %v49 = vld [vmem:[%s1 + $0xd8] sm:$0xff]
    %v50 = vld [vmem:[%s1 + $0xe0] sm:$0xff]
    %v51 = vld [vmem:[%s1 + $0xe8] sm:$0xff]
    %v52 = vld [vmem:[%s1 + $0xf0] sm:$0xff]
    %v53 = vld [vmem:[%s1 + $0xf8] sm:$0xff]
    %v54 = vld [vmem:[%s1 + $0x100] sm:$0xff]
    %v55 = vld [vmem:[%s1 + $0x108] sm:$0xff]
    %v56 = vld [vmem:[%s1 + $0x110] sm:$0xff]
    %v57 = vld [vmem:[%s1 + $0x118] sm:$0xff]
    %v58 = vld [vmem:[%s1 + $0x120] sm:$0xff]
    %v59 = vld [vmem:[%s1 + $0x128] sm:$0xff]
    %v60 = vld [vmem:[%s1 + $0x130] sm:$0xff]
    %v61 = vld [vmem:[%s1 + $0x138] sm:$0xff]
    %v62 = vld [vmem:[%s1 + $0x140] sm:$0xff]
    %v63 = vld [vmem:[%s1 + $0x148] sm:$0xff]
    %v64 = vld [vmem:[%s1 + $0x150] sm:$0xff]
    %v65 = vld [vmem:[%s1 + $0x158] sm:$0xff]
    %v66 = vld [vmem:[%s1 + $0x160] sm:$0xff]
    %v67 = vld [vmem:[%s1 + $0x168] sm:$0xff]
    %v68 = vld [vmem:[%s1 + $0x170] sm:$0xff]
    %v69 = vld [vmem:[%s1 + $0x178] sm:$0xff]
    %v70 = vld [vmem:[%s1 + $0x180] sm:$0xff]
    %v71 = vld [vmem:[%s1 + $0x188] sm:$0xff]
    %v72 = vld [vmem:[%s1 + $0x190] sm:$0xff]
    %v73 = vld [vmem:[%s1 + $0x198] sm:$0xff]
    %v74 = vld [vmem:[%s1 + $0x1a0] sm:$0xff]
    %v75 = vld [vmem:[%s1 + $0x1a8] sm:$0xff]
    %v76 = vld [vmem:[%s1 + $0x1b0] sm:$0xff]
    %v77 = vld [vmem:[%s1 + $0x1b8] sm:$0xff]
    %v78 = vld [vmem:[%s1 + $0x1c0] sm:$0xff]
    %v79 = vld [vmem:[%s1 + $0x1c8] sm:$0xff]
    %v80 = vld [vmem:[%s1 + $0x1d0] sm:$0xff]
    %v81 = vld [vmem:[%s1 + $0x1d8] sm:$0xff]
    %v82 = vld [vmem:[%s1 + $0x1e0] sm:$0xff]
    %v83 = vld [vmem:[%s1 + $0x1e8] sm:$0xff]
    %v84 = vld [vmem:[%s1 + $0x1f0] sm:$0xff]
    %v85 = vld [vmem:[%s1 + $0x1f8] sm:$0xff]
    %v86 = vld [vmem:[%s1 + $0x200] sm:$0xff]
    %v87 = vld [vmem:[%s1 + $0x208] sm:$0xff]
    %v88 = vld [vmem:[%s1 + $0x210] sm:$0xff]
    %v89 = vld [vmem:[%s1 + $0x218] sm:$0xff]
    %v90 = vld [vmem:[%s1 + $0x220] sm:$0xff]
    %v91 = vld [vmem:[%s1 + $0x228] sm:$0xff]
    %v92 = vld [vmem:[%s1 + $0x230] sm:$0xff]
    %v93 = vld [vmem:[%s1 + $0x238] sm:$0xff]
    %v94 = vld [vmem:[%s1 + $0x240] sm:$0xff]
    %v95 = vld [vmem:[%s1 + $0x248] sm:$0xff]
    %v96 = vld [vmem:[%s1 + $0x250] sm:$0xff]
    %v97 = vld [vmem:[%s1 + $0x258] sm:$0xff]
    %v98 = vld [vmem:[%s1 + $0x260] sm:$0xff]
    %v99 = vld [vmem:[%s1 + $0x268] sm:$0xff]
    %v100 = vld [vmem:[%s1 + $0x270] sm:$0xff]
    %v101 = vld [vmem:[%s1 + $0x278] sm:$0xff]
    %v102 = vld [vmem:[%s1 + $0x280] sm:$0xff]
    %v103 = vld [vmem:[%s1 + $0x288] sm:$0xff]
    %v104 = vld [vmem:[%s1 + $0x290] sm:$0xff]
    %v105 = vld [vmem:[%s1 + $0x298] sm:$0xff]
    %v106 = vld [vmem:[%s1 + $0x2a0] sm:$0xff]
    %v107 = vld [vmem:[%s1 + $0x2a8] sm:$0xff]
    %v108 = vld [vmem:[%s1 + $0x2b0] sm:$0xff]
    %v109 = vld [vmem:[%s1 + $0x2b8] sm:$0xff]
    %v110 = vld [vmem:[%s1 + $0x2c0] sm:$0xff]
    %v111 = vld [vmem:[%s1 + $0x2c8] sm:$0xff]
    %v112 = vld [vmem:[%s1 + $0x2d0] sm:$0xff]
    %v113 = vld [vmem:[%s1 + $0x2d8] sm:$0xff]
    %v114 = vld [vmem:[%s1 + $0x2e0] sm:$0xff]
    %v115 = vld [vmem:[%s1 + $0x2e8] sm:$0xff]
    %v116 = vld [vmem:[%s1 + $0x2f0] sm:$0xff]
    %v117 = vld [vmem:[%s1 + $0x2f8] sm:$0xff]
    %v118 = vld [vmem:[%s1 + $0x300] sm:$0xff]
    %v119 = vld [vmem:[%s1 + $0x308] sm:$0xff]
    %v120 = vld [vmem:[%s1 + $0x310] sm:$0xff]
    %v121 = vld [vmem:[%s1 + $0x318] sm:$0xff]
    %v122 = vld [vmem:[%s1 + $0x320] sm:$0xff]
    %v123 = vld [vmem:[%s1 + $0x328] sm:$0xff]
    %v124 = vld [vmem:[%s1 + $0x330] sm:$0xff]
    %v125 = vld [vmem:[%s1 + $0x338] sm:$0xff]
    %v126 = vld [vmem:[%s1 + $0x340] sm:$0xff]
    %v127 = vld [vmem:[%s1 + $0x348] sm:$0xff]
    %v128 = vld [vmem:[%s1 + $0x350] sm:$0xff]
    %v129 = vld [vmem:[%s1 + $0x358] sm:$0xff]
    %v130 = vld [vmem:[%s1 + $0x360] sm:$0xff]
    %v131 = vld [vmem:[%s1 + $0x368] sm:$0xff]
    %v132 = vld [vmem:[%s1 + $0x370] sm:$0xff]
    %v133 = vld [vmem:[%s1 + $0x378] sm:$0xff]
    %v134 = vld [vmem:[%s1 + $0x380] sm:$0xff]
    %v135 = vld [vmem:[%s1 + $0x388] sm:$0xff]
    %v136 = vld [vmem:[%s1 + $0x390] sm:$0xff]
    %v137 = vld [vmem:[%s1 + $0x398] sm:$0xff]
    %v138 = vld [vmem:[%s1 + $0x3a0] sm:$0xff]
    %v139 = vld [vmem:[%s1 + $0x3a8] sm:$0xff]
    %v140 = vld [vmem:[%s1 + $0x3b0] sm:$0xff]
    %v141 = vld [vmem:[%s1 + $0x3b8] sm:$0xff]
    %v142 = vld [vmem:[%s1 + $0x3c0] sm:$0xff]
    %v143 = vld [vmem:[%s1 + $0x3c8] sm:$0xff]
    %v144 = vld [vmem:[%s1 + $0x3d0] sm:$0xff]
    %v145 = vld [vmem:[%s1 + $0x3d8] sm:$0xff]
    %v146 = vld [vmem:[%s1 + $0x3e0] sm:$0xff]
    %v147 = vld [vmem:[%s1 + $0x3e8] sm:$0xff]
    %v148 = vld [vmem:[%s1 + $0x3f0] sm:$0xff]
    %v149 = vld [vmem:[%s1 + $0x3f8] sm:$0xff]
    %v150 = vld [vmem:[%s2] sm:$0xff]
    %v152 = vlaneseq
    %v153 = vshrl.u32 %v152, 7
    %v154 = vsub.s32 0, %v153
    %v155 = vrot.slane %v150, %v154
    %v156 = vlaneseq
    %v157 = vshrl.u32 %v156, 7
    %v158 = vsub.s32 1, %v157
    %v159 = vrot.slane %v150, %v158
    %v160 = vlaneseq
    %v161 = vshrl.u32 %v160, 7
    %v162 = vsub.s32 2, %v161
    %v163 = vrot.slane %v150, %v162
    %v164 = vlaneseq
    %v165 = vshrl.u32 %v164, 7
    %v166 = vsub.s32 3, %v165
    %v167 = vrot.slane %v150, %v166
    %v168 = vlaneseq
    %v169 = vshrl.u32 %v168, 7
    %v170 = vsub.s32 4, %v169
    %v171 = vrot.slane %v150, %v170
    %v172 = vlaneseq
    %v173 = vshrl.u32 %v172, 7
    %v174 = vsub.s32 5, %v173
    %v175 = vrot.slane %v150, %v174
    %v176 = vlaneseq
    %v177 = vshrl.u32 %v176, 7
    %v178 = vsub.s32 6, %v177
    %v179 = vrot.slane %v150, %v178
    %v180 = vlaneseq
    %v181 = vshrl.u32 %v180, 7
    %v182 = vsub.s32 7, %v181
    %v183 = vrot.slane %v150, %v182
    %192 = vmatprep.subr.mxu0 %v23
    %193 = vmatpush1.msra.mxu0 %v22
    %194 = vmatprep.subr.mxu0 %v31
    %195 = vmatpush1.msra.mxu0 %v30
    %196 = vmatprep.subr.mxu0 %v39
    %197 = vmatpush1.msra.mxu0 %v38
    %198 = vmatprep.subr.mxu0 %v47
    %199 = vmatpush1.msra.mxu0 %v46
    %200 = vmatprep.subr.mxu0 %v55
    %201 = vmatpush1.msra.mxu0 %v54
    %202 = vmatprep.subr.mxu0 %v63
    %203 = vmatpush1.msra.mxu0 %v62
    %204 = vmatprep.subr.mxu0 %v71
    %205 = vmatpush1.msra.mxu0 %v70
    %206 = vmatprep.subr.mxu0 %v79
    %207 = vmatpush1.msra.mxu0 %v78
    %208 = vmatprep.subr.mxu0 %v87
    %209 = vmatpush1.msra.mxu0 %v86
    %210 = vmatprep.subr.mxu0 %v95
    %211 = vmatpush1.msra.mxu0 %v94
    %212 = vmatprep.subr.mxu0 %v103
    %213 = vmatpush1.msra.mxu0 %v102
    %214 = vmatprep.subr.mxu0 %v111
    %215 = vmatpush1.msra.mxu0 %v110
    %216 = vmatprep.subr.mxu0 %v119
    %217 = vmatpush1.msra.mxu0 %v118
    %218 = vmatprep.subr.mxu0 %v127
    %219 = vmatpush1.msra.mxu0 %v126
    %220 = vmatprep.subr.mxu0 %v135
    %221 = vmatpush1.msra.mxu0 %v134
    %222 = vmatprep.subr.mxu0 %v143
    %223 = vmatpush1.msra.mxu0 %v142
    %224 = vmatprep.subr.mxu0 0.0
    %225 = vmatpush1.msra.mxu0 0.0
    %226 = vmatprep.subr.mxu0 0.0
    %227 = vmatpush1.msra.mxu0 0.0
    %228 = vmatprep.subr.mxu0 0.0
    %229 = vmatpush1.msra.mxu0 0.0
    %230 = vmatprep.subr.mxu0 0.0
    %231 = vmatpush1.msra.mxu0 0.0
    %232 = vmatprep.subr.mxu0 0.0
    %233 = vmatpush1.msra.mxu0 0.0
    %234 = vmatprep.subr.mxu0 0.0
    %235 = vmatpush1.msra.mxu0 0.0
    %236 = vmatprep.subr.mxu0 0.0
    %237 = vmatpush1.msra.mxu0 0.0
    %238 = vmatprep.subr.mxu0 0.0
    %239 = vmatpush1.msra.mxu0 0.0
    %240 = vmatprep.subr.mxu0 0.0
    %241 = vmatpush1.msra.mxu0 0.0
    %242 = vmatprep.subr.mxu0 0.0
    %243 = vmatpush1.msra.mxu0 0.0
    %244 = vmatprep.subr.mxu0 0.0
    %245 = vmatpush1.msra.mxu0 0.0
    %246 = vmatprep.subr.mxu0 0.0
    %247 = vmatpush1.msra.mxu0 0.0
    %248 = vmatprep.subr.mxu0 0.0
    %249 = vmatpush1.msra.mxu0 0.0
    %250 = vmatprep.subr.mxu0 0.0
    %251 = vmatpush1.msra.mxu0 0.0
    %252 = vmatprep.subr.mxu0 0.0
    %253 = vmatpush1.msra.mxu0 0.0
    %254 = vmatprep.subr.mxu0 0.0
    %255 = vmatpush1.msra.mxu0 0.0
    %256 = vmatprep.mubr.f32.mxu0 0.0
    %257 = vmatmul.mubr.f32.gmra.mrb[0].mxu0 %v21
    %v258 = vpop.f32.mrb[0].mxu0
    %v259 = vadd.f32 %v155, %v258
    %v260 = vpop.f32.mrb[0].mxu0
    %v261 = vadd.f32 %v159, %v260
    %262 = vdwg.mxu0
    %263 = vmatprep.subr.mxu0 %v25
    %264 = vmatpush1.msra.mxu0 %v24
    %265 = vmatprep.subr.mxu0 %v33
    %266 = vmatpush1.msra.mxu0 %v32
    %267 = vmatprep.subr.mxu0 %v41
    %268 = vmatpush1.msra.mxu0 %v40
    %269 = vmatprep.subr.mxu0 %v49
    %270 = vmatpush1.msra.mxu0 %v48
    %271 = vmatprep.subr.mxu0 %v57
    %272 = vmatpush1.msra.mxu0 %v56
    %273 = vmatprep.subr.mxu0 %v65
    %274 = vmatpush1.msra.mxu0 %v64
    %275 = vmatprep.subr.mxu0 %v73
    %276 = vmatpush1.msra.mxu0 %v72
    %277 = vmatprep.subr.mxu0 %v81
    %278 = vmatpush1.msra.mxu0 %v80
    %279 = vmatprep.subr.mxu0 %v89
    %280 = vmatpush1.msra.mxu0 %v88
    %281 = vmatprep.subr.mxu0 %v97
    %282 = vmatpush1.msra.mxu0 %v96
    %283 = vmatprep.subr.mxu0 %v105
    %284 = vmatpush1.msra.mxu0 %v104
    %285 = vmatprep.subr.mxu0 %v113
    %286 = vmatpush1.msra.mxu0 %v112
    %287 = vmatprep.subr.mxu0 %v121
    %288 = vmatpush1.msra.mxu0 %v120
    %289 = vmatprep.subr.mxu0 %v129
    %290 = vmatpush1.msra.mxu0 %v128
    %291 = vmatprep.subr.mxu0 %v137
    %292 = vmatpush1.msra.mxu0 %v136
    %293 = vmatprep.subr.mxu0 %v145
    %294 = vmatpush1.msra.mxu0 %v144
    %295 = vmatprep.subr.mxu0 0.0
    %296 = vmatpush1.msra.mxu0 0.0
    %297 = vmatprep.subr.mxu0 0.0
    %298 = vmatpush1.msra.mxu0 0.0
    %299 = vmatprep.subr.mxu0 0.0
    %300 = vmatpush1.msra.mxu0 0.0
    %301 = vmatprep.subr.mxu0 0.0
    %302 = vmatpush1.msra.mxu0 0.0
    %303 = vmatprep.subr.mxu0 0.0
    %304 = vmatpush1.msra.mxu0 0.0
    %305 = vmatprep.subr.mxu0 0.0
    %306 = vmatpush1.msra.mxu0 0.0
    %307 = vmatprep.subr.mxu0 0.0
    %308 = vmatpush1.msra.mxu0 0.0
    %309 = vmatprep.subr.mxu0 0.0
    %310 = vmatpush1.msra.mxu0 0.0
    %311 = vmatprep.subr.mxu0 0.0
    %312 = vmatpush1.msra.mxu0 0.0
    %313 = vmatprep.subr.mxu0 0.0
    %314 = vmatpush1.msra.mxu0 0.0
    %315 = vmatprep.subr.mxu0 0.0
    %316 = vmatpush1.msra.mxu0 0.0
    %317 = vmatprep.subr.mxu0 0.0
    %318 = vmatpush1.msra.mxu0 0.0
    %319 = vmatprep.subr.mxu0 0.0
    %320 = vmatpush1.msra.mxu0 0.0
    %321 = vmatprep.subr.mxu0 0.0
    %322 = vmatpush1.msra.mxu0 0.0
    %323 = vmatprep.subr.mxu0 0.0
    %324 = vmatpush1.msra.mxu0 0.0
    %325 = vmatprep.subr.mxu0 0.0
    %326 = vmatpush1.msra.mxu0 0.0
    %327 = vmatprep.mubr.f32.mxu0 0.0
    %328 = vmatmul.mubr.f32.gmra.mrb[0].mxu0 %v21
    %v329 = vpop.f32.mrb[0].mxu0
    %v330 = vadd.f32 %v163, %v329
    %v331 = vpop.f32.mrb[0].mxu0
    %v332 = vadd.f32 %v167, %v331
    %333 = vdwg.mxu0
    %334 = vmatprep.subr.mxu0 %v27
    %335 = vmatpush1.msra.mxu0 %v26
    %336 = vmatprep.subr.mxu0 %v35
    %337 = vmatpush1.msra.mxu0 %v34
    %338 = vmatprep.subr.mxu0 %v43
    %339 = vmatpush1.msra.mxu0 %v42
    %340 = vmatprep.subr.mxu0 %v51
    %341 = vmatpush1.msra.mxu0 %v50
    %342 = vmatprep.subr.mxu0 %v59
    %343 = vmatpush1.msra.mxu0 %v58
    %344 = vmatprep.subr.mxu0 %v67
    %345 = vmatpush1.msra.mxu0 %v66
    %346 = vmatprep.subr.mxu0 %v75
    %347 = vmatpush1.msra.mxu0 %v74
    %348 = vmatprep.subr.mxu0 %v83
    %349 = vmatpush1.msra.mxu0 %v82
    %350 = vmatprep.subr.mxu0 %v91
    %351 = vmatpush1.msra.mxu0 %v90
    %352 = vmatprep.subr.mxu0 %v99
    %353 = vmatpush1.msra.mxu0 %v98
    %354 = vmatprep.subr.mxu0 %v107
    %355 = vmatpush1.msra.mxu0 %v106
    %356 = vmatprep.subr.mxu0 %v115
    %357 = vmatpush1.msra.mxu0 %v114
    %358 = vmatprep.subr.mxu0 %v123
    %359 = vmatpush1.msra.mxu0 %v122
    %360 = vmatprep.subr.mxu0 %v131
    %361 = vmatpush1.msra.mxu0 %v130
    %362 = vmatprep.subr.mxu0 %v139
    %363 = vmatpush1.msra.mxu0 %v138
    %364 = vmatprep.subr.mxu0 %v147
    %365 = vmatpush1.msra.mxu0 %v146
    %366 = vmatprep.subr.mxu0 0.0
    %367 = vmatpush1.msra.mxu0 0.0
    %368 = vmatprep.subr.mxu0 0.0
    %369 = vmatpush1.msra.mxu0 0.0
    %370 = vmatprep.subr.mxu0 0.0
    %371 = vmatpush1.msra.mxu0 0.0
    %372 = vmatprep.subr.mxu0 0.0
    %373 = vmatpush1.msra.mxu0 0.0
    %374 = vmatprep.subr.mxu0 0.0
    %375 = vmatpush1.msra.mxu0 0.0
    %376 = vmatprep.subr.mxu0 0.0
    %377 = vmatpush1.msra.mxu0 0.0
    %378 = vmatprep.subr.mxu0 0.0
    %379 = vmatpush1.msra.mxu0 0.0
    %380 = vmatprep.subr.mxu0 0.0
    %381 = vmatpush1.msra.mxu0 0.0
    %382 = vmatprep.subr.mxu0 0.0
    %383 = vmatpush1.msra.mxu0 0.0
    %384 = vmatprep.subr.mxu0 0.0
    %385 = vmatpush1.msra.mxu0 0.0
    %386 = vmatprep.subr.mxu0 0.0
    %387 = vmatpush1.msra.mxu0 0.0
    %388 = vmatprep.subr.mxu0 0.0
    %389 = vmatpush1.msra.mxu0 0.0
    %390 = vmatprep.subr.mxu0 0.0
    %391 = vmatpush1.msra.mxu0 0.0
    %392 = vmatprep.subr.mxu0 0.0
    %393 = vmatpush1.msra.mxu0 0.0
    %394 = vmatprep.subr.mxu0 0.0
    %395 = vmatpush1.msra.mxu0 0.0
    %396 = vmatprep.subr.mxu0 0.0
    %397 = vmatpush1.msra.mxu0 0.0
    %398 = vmatprep.mubr.f32.mxu0 0.0
    %399 = vmatmul.mubr.f32.gmra.mrb[0].mxu0 %v21
    %v400 = vpop.f32.mrb[0].mxu0
    %v401 = vadd.f32 %v171, %v400
    %v402 = vpop.f32.mrb[0].mxu0
    %v403 = vadd.f32 %v175, %v402
    %404 = vdwg.mxu0
    %405 = vmatprep.subr.mxu0 %v29
    %406 = vmatpush1.msra.mxu0 %v28
    %407 = vmatprep.subr.mxu0 %v37
    %408 = vmatpush1.msra.mxu0 %v36
    %409 = vmatprep.subr.mxu0 %v45
    %410 = vmatpush1.msra.mxu0 %v44
    %411 = vmatprep.subr.mxu0 %v53
    %412 = vmatpush1.msra.mxu0 %v52
    %413 = vmatprep.subr.mxu0 %v61
    %414 = vmatpush1.msra.mxu0 %v60
    %415 = vmatprep.subr.mxu0 %v69
    %416 = vmatpush1.msra.mxu0 %v68
    %417 = vmatprep.subr.mxu0 %v77
    %418 = vmatpush1.msra.mxu0 %v76
    %419 = vmatprep.subr.mxu0 %v85
    %420 = vmatpush1.msra.mxu0 %v84
    %421 = vmatprep.subr.mxu0 %v93
    %422 = vmatpush1.msra.mxu0 %v92
    %423 = vmatprep.subr.mxu0 %v101
    %424 = vmatpush1.msra.mxu0 %v100
    %425 = vmatprep.subr.mxu0 %v109
    %426 = vmatpush1.msra.mxu0 %v108
    %427 = vmatprep.subr.mxu0 %v117
    %428 = vmatpush1.msra.mxu0 %v116
    %429 = vmatprep.subr.mxu0 %v125
    %430 = vmatpush1.msra.mxu0 %v124
    %431 = vmatprep.subr.mxu0 %v133
    %432 = vmatpush1.msra.mxu0 %v132
    %433 = vmatprep.subr.mxu0 %v141
    %434 = vmatpush1.msra.mxu0 %v140
    %435 = vmatprep.subr.mxu0 %v149
    %436 = vmatpush1.msra.mxu0 %v148
    %437 = vmatprep.subr.mxu0 0.0
    %438 = vmatpush1.msra.mxu0 0.0
    %439 = vmatprep.subr.mxu0 0.0
    %440 = vmatpush1.msra.mxu0 0.0
    %441 = vmatprep.subr.mxu0 0.0
    %442 = vmatpush1.msra.mxu0 0.0
    %443 = vmatprep.subr.mxu0 0.0
    %444 = vmatpush1.msra.mxu0 0.0
    %445 = vmatprep.subr.mxu0 0.0
    %446 = vmatpush1.msra.mxu0 0.0
    %447 = vmatprep.subr.mxu0 0.0
    %448 = vmatpush1.msra.mxu0 0.0
    %449 = vmatprep.subr.mxu0 0.0
    %450 = vmatpush1.msra.mxu0 0.0
    %451 = vmatprep.subr.mxu0 0.0
    %452 = vmatpush1.msra.mxu0 0.0
    %453 = vmatprep.subr.mxu0 0.0
    %454 = vmatpush1.msra.mxu0 0.0
    %455 = vmatprep.subr.mxu0 0.0
    %456 = vmatpush1.msra.mxu0 0.0
    %457 = vmatprep.subr.mxu0 0.0
    %458 = vmatpush1.msra.mxu0 0.0
    %459 = vmatprep.subr.mxu0 0.0
    %460 = vmatpush1.msra.mxu0 0.0
    %461 = vmatprep.subr.mxu0 0.0
    %462 = vmatpush1.msra.mxu0 0.0
    %463 = vmatprep.subr.mxu0 0.0
    %464 = vmatpush1.msra.mxu0 0.0
    %465 = vmatprep.subr.mxu0 0.0
    %466 = vmatpush1.msra.mxu0 0.0
    %467 = vmatprep.subr.mxu0 0.0
    %468 = vmatpush1.msra.mxu0 0.0
    %469 = vmatprep.mubr.f32.mxu0 0.0
    %470 = vmatmul.mubr.f32.gmra.mrb[0].mxu0 %v21
    %v471 = vpop.f32.mrb[0].mxu0
    %v472 = vadd.f32 %v179, %v471
    %v473 = vpop.f32.mrb[0].mxu0
    %v474 = vadd.f32 %v183, %v473
    %475 = vdwg.mxu0
    %v476 = vmax.f32 %v259, 0.0
    %v477 = vmax.f32 %v261, 0.0
    %v478 = vmax.f32 %v330, 0.0
    %v479 = vmax.f32 %v332, 0.0
    %v480 = vmax.f32 %v401, 0.0
    %v481 = vmax.f32 %v403, 0.0
    %v482 = vmax.f32 %v472, 0.0
    %v483 = vmax.f32 %v474, 0.0
    %v484 = vld [vmem:[%s3] sm:$0xff]
    %v485 = vld [vmem:[%s3 + $0x8] sm:$0xff]
    %v486 = vld [vmem:[%s3 + $0x10] sm:$0xff]
    %v487 = vld [vmem:[%s3 + $0x18] sm:$0xff]
    %v488 = vld [vmem:[%s3 + $0x20] sm:$0xff]
    %v489 = vld [vmem:[%s3 + $0x28] sm:$0xff]
    %v490 = vld [vmem:[%s3 + $0x30] sm:$0xff]
    %v491 = vld [vmem:[%s3 + $0x38] sm:$0xff]
    %v492 = vld [vmem:[%s3 + $0x40] sm:$0xff]
    %v493 = vld [vmem:[%s3 + $0x48] sm:$0xff]
    %v494 = vld [vmem:[%s3 + $0x50] sm:$0xff]
    %v495 = vld [vmem:[%s3 + $0x58] sm:$0xff]
    %v496 = vld [vmem:[%s3 + $0x60] sm:$0xff]
    %v497 = vld [vmem:[%s3 + $0x68] sm:$0xff]
    %v498 = vld [vmem:[%s3 + $0x70] sm:$0xff]
    %v499 = vld [vmem:[%s3 + $0x78] sm:$0xff]
    %v500 = vld [vmem:[%s3 + $0x80] sm:$0xff]
    %v501 = vld [vmem:[%s3 + $0x88] sm:$0xff]
    %v502 = vld [vmem:[%s3 + $0x90] sm:$0xff]
    %v503 = vld [vmem:[%s3 + $0x98] sm:$0xff]
    %v504 = vld [vmem:[%s3 + $0xa0] sm:$0xff]
    %v505 = vld [vmem:[%s3 + $0xa8] sm:$0xff]
    %v506 = vld [vmem:[%s3 + $0xb0] sm:$0xff]
    %v507 = vld [vmem:[%s3 + $0xb8] sm:$0xff]
    %v508 = vld [vmem:[%s3 + $0xc0] sm:$0xff]
    %v509 = vld [vmem:[%s3 + $0xc8] sm:$0xff]
    %v510 = vld [vmem:[%s3 + $0xd0] sm:$0xff]
    %v511 = vld [vmem:[%s3 + $0xd8] sm:$0xff]
    %v512 = vld [vmem:[%s3 + $0xe0] sm:$0xff]
    %v513 = vld [vmem:[%s3 + $0xe8] sm:$0xff]
    %v514 = vld [vmem:[%s3 + $0xf0] sm:$0xff]
    %v515 = vld [vmem:[%s3 + $0xf8] sm:$0xff]
    %v516 = vld [vmem:[%s3 + $0x100] sm:$0xff]
    %v517 = vld [vmem:[%s3 + $0x108] sm:$0xff]
    %v518 = vld [vmem:[%s3 + $0x110] sm:$0xff]
    %v519 = vld [vmem:[%s3 + $0x118] sm:$0xff]
    %v520 = vld [vmem:[%s3 + $0x120] sm:$0xff]
    %v521 = vld [vmem:[%s3 + $0x128] sm:$0xff]
    %v522 = vld [vmem:[%s3 + $0x130] sm:$0xff]
    %v523 = vld [vmem:[%s3 + $0x138] sm:$0xff]
    %v524 = vld [vmem:[%s3 + $0x140] sm:$0xff]
    %v525 = vld [vmem:[%s3 + $0x148] sm:$0xff]
    %v526 = vld [vmem:[%s3 + $0x150] sm:$0xff]
    %v527 = vld [vmem:[%s3 + $0x158] sm:$0xff]
    %v528 = vld [vmem:[%s3 + $0x160] sm:$0xff]
    %v529 = vld [vmem:[%s3 + $0x168] sm:$0xff]
    %v530 = vld [vmem:[%s3 + $0x170] sm:$0xff]
    %v531 = vld [vmem:[%s3 + $0x178] sm:$0xff]
    %v532 = vld [vmem:[%s3 + $0x180] sm:$0xff]
    %v533 = vld [vmem:[%s3 + $0x188] sm:$0xff]
    %v534 = vld [vmem:[%s3 + $0x190] sm:$0xff]
    %v535 = vld [vmem:[%s3 + $0x198] sm:$0xff]
    %v536 = vld [vmem:[%s3 + $0x1a0] sm:$0xff]
    %v537 = vld [vmem:[%s3 + $0x1a8] sm:$0xff]
    %v538 = vld [vmem:[%s3 + $0x1b0] sm:$0xff]
    %v539 = vld [vmem:[%s3 + $0x1b8] sm:$0xff]
    %v540 = vld [vmem:[%s3 + $0x1c0] sm:$0xff]
    %v541 = vld [vmem:[%s3 + $0x1c8] sm:$0xff]
    %v542 = vld [vmem:[%s3 + $0x1d0] sm:$0xff]
    %v543 = vld [vmem:[%s3 + $0x1d8] sm:$0xff]
    %v544 = vld [vmem:[%s3 + $0x1e0] sm:$0xff]
    %v545 = vld [vmem:[%s3 + $0x1e8] sm:$0xff]
    %v546 = vld [vmem:[%s3 + $0x1f0] sm:$0xff]
    %v547 = vld [vmem:[%s3 + $0x1f8] sm:$0xff]
    %v548 = vld [vmem:[%s3 + $0x200] sm:$0xff]
    %v549 = vld [vmem:[%s3 + $0x208] sm:$0xff]
    %v550 = vld [vmem:[%s3 + $0x210] sm:$0xff]
    %v551 = vld [vmem:[%s3 + $0x218] sm:$0xff]
    %v552 = vld [vmem:[%s3 + $0x220] sm:$0xff]
    %v553 = vld [vmem:[%s3 + $0x228] sm:$0xff]
    %v554 = vld [vmem:[%s3 + $0x230] sm:$0xff]
    %v555 = vld [vmem:[%s3 + $0x238] sm:$0xff]
    %v556 = vld [vmem:[%s3 + $0x240] sm:$0xff]
    %v557 = vld [vmem:[%s3 + $0x248] sm:$0xff]
    %v558 = vld [vmem:[%s3 + $0x250] sm:$0xff]
    %v559 = vld [vmem:[%s3 + $0x258] sm:$0xff]
    %v560 = vld [vmem:[%s3 + $0x260] sm:$0xff]
    %v561 = vld [vmem:[%s3 + $0x268] sm:$0xff]
    %v562 = vld [vmem:[%s3 + $0x270] sm:$0xff]
    %v563 = vld [vmem:[%s3 + $0x278] sm:$0xff]
    %v564 = vld [vmem:[%s3 + $0x280] sm:$0xff]
    %v565 = vld [vmem:[%s3 + $0x288] sm:$0xff]
    %v566 = vld [vmem:[%s3 + $0x290] sm:$0xff]
    %v567 = vld [vmem:[%s3 + $0x298] sm:$0xff]
    %v568 = vld [vmem:[%s3 + $0x2a0] sm:$0xff]
    %v569 = vld [vmem:[%s3 + $0x2a8] sm:$0xff]
    %v570 = vld [vmem:[%s3 + $0x2b0] sm:$0xff]
    %v571 = vld [vmem:[%s3 + $0x2b8] sm:$0xff]
    %v572 = vld [vmem:[%s3 + $0x2c0] sm:$0xff]
    %v573 = vld [vmem:[%s3 + $0x2c8] sm:$0xff]
    %v574 = vld [vmem:[%s3 + $0x2d0] sm:$0xff]
    %v575 = vld [vmem:[%s3 + $0x2d8] sm:$0xff]
    %v576 = vld [vmem:[%s3 + $0x2e0] sm:$0xff]
    %v577 = vld [vmem:[%s3 + $0x2e8] sm:$0xff]
    %v578 = vld [vmem:[%s3 + $0x2f0] sm:$0xff]
    %v579 = vld [vmem:[%s3 + $0x2f8] sm:$0xff]
    %v580 = vld [vmem:[%s3 + $0x300] sm:$0xff]
    %v581 = vld [vmem:[%s3 + $0x308] sm:$0xff]
    %v582 = vld [vmem:[%s3 + $0x310] sm:$0xff]
    %v583 = vld [vmem:[%s3 + $0x318] sm:$0xff]
    %v584 = vld [vmem:[%s3 + $0x320] sm:$0xff]
    %v585 = vld [vmem:[%s3 + $0x328] sm:$0xff]
    %v586 = vld [vmem:[%s3 + $0x330] sm:$0xff]
    %v587 = vld [vmem:[%s3 + $0x338] sm:$0xff]
    %v588 = vld [vmem:[%s3 + $0x340] sm:$0xff]
    %v589 = vld [vmem:[%s3 + $0x348] sm:$0xff]
    %v590 = vld [vmem:[%s3 + $0x350] sm:$0xff]
    %v591 = vld [vmem:[%s3 + $0x358] sm:$0xff]
    %v592 = vld [vmem:[%s3 + $0x360] sm:$0xff]
    %v593 = vld [vmem:[%s3 + $0x368] sm:$0xff]
    %v594 = vld [vmem:[%s3 + $0x370] sm:$0xff]
    %v595 = vld [vmem:[%s3 + $0x378] sm:$0xff]
    %v596 = vld [vmem:[%s3 + $0x380] sm:$0xff]
    %v597 = vld [vmem:[%s3 + $0x388] sm:$0xff]
    %v598 = vld [vmem:[%s3 + $0x390] sm:$0xff]
    %v599 = vld [vmem:[%s3 + $0x398] sm:$0xff]
    %v600 = vld [vmem:[%s3 + $0x3a0] sm:$0xff]
    %v601 = vld [vmem:[%s3 + $0x3a8] sm:$0xff]
    %v602 = vld [vmem:[%s3 + $0x3b0] sm:$0xff]
    %v603 = vld [vmem:[%s3 + $0x3b8] sm:$0xff]
    %v604 = vld [vmem:[%s3 + $0x3c0] sm:$0xff]
    %v605 = vld [vmem:[%s3 + $0x3c8] sm:$0xff]
    %v606 = vld [vmem:[%s3 + $0x3d0] sm:$0xff]
    %v607 = vld [vmem:[%s3 + $0x3d8] sm:$0xff]
    %v608 = vld [vmem:[%s3 + $0x3e0] sm:$0xff]
    %v609 = vld [vmem:[%s3 + $0x3e8] sm:$0xff]
    %v610 = vld [vmem:[%s3 + $0x3f0] sm:$0xff]
    %v611 = vld [vmem:[%s3 + $0x3f8] sm:$0xff]
    %v612 = vld [vmem:[%s4] sm:$0x1]
    %v614 = vlaneseq
    %v615 = vshrl.u32 %v614, 7
    %v616 = vsub.s32 0, %v615
    %v617 = vrot.slane %v612, %v616
    %619 = vmatprep.subr.mxu0 0.0
    %620 = vmatpush1.msra.mxu0 %v484
    %621 = vmatprep.subr.mxu0 0.0
    %622 = vmatpush1.msra.mxu0 %v485
    %623 = vmatprep.subr.mxu0 0.0
    %624 = vmatpush1.msra.mxu0 %v486
    %625 = vmatprep.subr.mxu0 0.0
    %626 = vmatpush1.msra.mxu0 %v487
    %627 = vmatprep.subr.mxu0 0.0
    %628 = vmatpush1.msra.mxu0 %v488
    %629 = vmatprep.subr.mxu0 0.0
    %630 = vmatpush1.msra.mxu0 %v489
    %631 = vmatprep.subr.mxu0 0.0
    %632 = vmatpush1.msra.mxu0 %v490
    %633 = vmatprep.subr.mxu0 0.0
    %634 = vmatpush1.msra.mxu0 %v491
    %635 = vmatprep.subr.mxu0 0.0
    %636 = vmatpush1.msra.mxu0 %v492
    %637 = vmatprep.subr.mxu0 0.0
    %638 = vmatpush1.msra.mxu0 %v493
    %639 = vmatprep.subr.mxu0 0.0
    %640 = vmatpush1.msra.mxu0 %v494
    %641 = vmatprep.subr.mxu0 0.0
    %642 = vmatpush1.msra.mxu0 %v495
    %643 = vmatprep.subr.mxu0 0.0
    %644 = vmatpush1.msra.mxu0 %v496
    %645 = vmatprep.subr.mxu0 0.0
    %646 = vmatpush1.msra.mxu0 %v497
    %647 = vmatprep.subr.mxu0 0.0
    %648 = vmatpush1.msra.mxu0 %v498
    %649 = vmatprep.subr.mxu0 0.0
    %650 = vmatpush1.msra.mxu0 %v499
    %651 = vmatprep.subr.mxu0 0.0
    %652 = vmatpush1.msra.mxu0 %v500
    %653 = vmatprep.subr.mxu0 0.0
    %654 = vmatpush1.msra.mxu0 %v501
    %655 = vmatprep.subr.mxu0 0.0
    %656 = vmatpush1.msra.mxu0 %v502
    %657 = vmatprep.subr.mxu0 0.0
    %658 = vmatpush1.msra.mxu0 %v503
    %659 = vmatprep.subr.mxu0 0.0
    %660 = vmatpush1.msra.mxu0 %v504
    %661 = vmatprep.subr.mxu0 0.0
    %662 = vmatpush1.msra.mxu0 %v505
    %663 = vmatprep.subr.mxu0 0.0
    %664 = vmatpush1.msra.mxu0 %v506
    %665 = vmatprep.subr.mxu0 0.0
    %666 = vmatpush1.msra.mxu0 %v507
    %667 = vmatprep.subr.mxu0 0.0
    %668 = vmatpush1.msra.mxu0 %v508
    %669 = vmatprep.subr.mxu0 0.0
    %670 = vmatpush1.msra.mxu0 %v509
    %671 = vmatprep.subr.mxu0 0.0
    %672 = vmatpush1.msra.mxu0 %v510
    %673 = vmatprep.subr.mxu0 0.0
    %674 = vmatpush1.msra.mxu0 %v511
    %675 = vmatprep.subr.mxu0 0.0
    %676 = vmatpush1.msra.mxu0 %v512
    %677 = vmatprep.subr.mxu0 0.0
    %678 = vmatpush1.msra.mxu0 %v513
    %679 = vmatprep.subr.mxu0 0.0
    %680 = vmatpush1.msra.mxu0 %v514
    %681 = vmatprep.subr.mxu0 0.0
    %682 = vmatpush1.msra.mxu0 %v515
    %683 = vmatprep.mubr.f32.mxu0 %v477
    %684 = vmatmul.mubr.f32.gmra.mrb[0].mxu0 %v476
    %v685 = vpop.f32.mrb[0].mxu0
    %v686 = vadd.f32 %v617, %v685
    %v687 = vpop.f32.mrb[0].mxu0
    %688 = vdwg.mxu0
    %689 = vmatprep.subr.mxu0 0.0
    %690 = vmatpush1.msra.mxu0 %v516
    %691 = vmatprep.subr.mxu0 0.0
    %692 = vmatpush1.msra.mxu0 %v517
    %693 = vmatprep.subr.mxu0 0.0
    %694 = vmatpush1.msra.mxu0 %v518
    %695 = vmatprep.subr.mxu0 0.0
    %696 = vmatpush1.msra.mxu0 %v519
    %697 = vmatprep.subr.mxu0 0.0
    %698 = vmatpush1.msra.mxu0 %v520
    %699 = vmatprep.subr.mxu0 0.0
    %700 = vmatpush1.msra.mxu0 %v521
    %701 = vmatprep.subr.mxu0 0.0
    %702 = vmatpush1.msra.mxu0 %v522
    %703 = vmatprep.subr.mxu0 0.0
    %704 = vmatpush1.msra.mxu0 %v523
    %705 = vmatprep.subr.mxu0 0.0
    %706 = vmatpush1.msra.mxu0 %v524
    %707 = vmatprep.subr.mxu0 0.0
    %708 = vmatpush1.msra.mxu0 %v525
    %709 = vmatprep.subr.mxu0 0.0
    %710 = vmatpush1.msra.mxu0 %v526
    %711 = vmatprep.subr.mxu0 0.0
    %712 = vmatpush1.msra.mxu0 %v527
    %713 = vmatprep.subr.mxu0 0.0
    %714 = vmatpush1.msra.mxu0 %v528
    %715 = vmatprep.subr.mxu0 0.0
    %716 = vmatpush1.msra.mxu0 %v529
    %717 = vmatprep.subr.mxu0 0.0
    %718 = vmatpush1.msra.mxu0 %v530
    %719 = vmatprep.subr.mxu0 0.0
    %720 = vmatpush1.msra.mxu0 %v531
    %721 = vmatprep.subr.mxu0 0.0
    %722 = vmatpush1.msra.mxu0 %v532
    %723 = vmatprep.subr.mxu0 0.0
    %724 = vmatpush1.msra.mxu0 %v533
    %725 = vmatprep.subr.mxu0 0.0
    %726 = vmatpush1.msra.mxu0 %v534
    %727 = vmatprep.subr.mxu0 0.0
    %728 = vmatpush1.msra.mxu0 %v535
    %729 = vmatprep.subr.mxu0 0.0
    %730 = vmatpush1.msra.mxu0 %v536
    %731 = vmatprep.subr.mxu0 0.0
    %732 = vmatpush1.msra.mxu0 %v537
    %733 = vmatprep.subr.mxu0 0.0
    %734 = vmatpush1.msra.mxu0 %v538
    %735 = vmatprep.subr.mxu0 0.0
    %736 = vmatpush1.msra.mxu0 %v539
    %737 = vmatprep.subr.mxu0 0.0
    %738 = vmatpush1.msra.mxu0 %v540
    %739 = vmatprep.subr.mxu0 0.0
    %740 = vmatpush1.msra.mxu0 %v541
    %741 = vmatprep.subr.mxu0 0.0
    %742 = vmatpush1.msra.mxu0 %v542
    %743 = vmatprep.subr.mxu0 0.0
    %744 = vmatpush1.msra.mxu0 %v543
    %745 = vmatprep.subr.mxu0 0.0
    %746 = vmatpush1.msra.mxu0 %v544
    %747 = vmatprep.subr.mxu0 0.0
    %748 = vmatpush1.msra.mxu0 %v545
    %749 = vmatprep.subr.mxu0 0.0
    %750 = vmatpush1.msra.mxu0 %v546
    %751 = vmatprep.subr.mxu0 0.0
    %752 = vmatpush1.msra.mxu0 %v547
    %753 = vmatprep.mubr.f32.mxu0 %v479
    %754 = vmatmul.mubr.f32.gmra.mrb[0].mxu0 %v478
    %v755 = vpop.f32.mrb[0].mxu0
    %v756 = vadd.f32 %v686, %v755
    %v757 = vpop.f32.mrb[0].mxu0
    %758 = vdwg.mxu0
    %759 = vmatprep.subr.mxu0 0.0
    %760 = vmatpush1.msra.mxu0 %v548
    %761 = vmatprep.subr.mxu0 0.0
    %762 = vmatpush1.msra.mxu0 %v549
    %763 = vmatprep.subr.mxu0 0.0
    %764 = vmatpush1.msra.mxu0 %v550
    %765 = vmatprep.subr.mxu0 0.0
    %766 = vmatpush1.msra.mxu0 %v551
    %767 = vmatprep.subr.mxu0 0.0
    %768 = vmatpush1.msra.mxu0 %v552
    %769 = vmatprep.subr.mxu0 0.0
    %770 = vmatpush1.msra.mxu0 %v553
    %771 = vmatprep.subr.mxu0 0.0
    %772 = vmatpush1.msra.mxu0 %v554
    %773 = vmatprep.subr.mxu0 0.0
    %774 = vmatpush1.msra.mxu0 %v555
    %775 = vmatprep.subr.mxu0 0.0
    %776 = vmatpush1.msra.mxu0 %v556
    %777 = vmatprep.subr.mxu0 0.0
    %778 = vmatpush1.msra.mxu0 %v557
    %779 = vmatprep.subr.mxu0 0.0
    %780 = vmatpush1.msra.mxu0 %v558
    %781 = vmatprep.subr.mxu0 0.0
    %782 = vmatpush1.msra.mxu0 %v559
    %783 = vmatprep.subr.mxu0 0.0
    %784 = vmatpush1.msra.mxu0 %v560
    %785 = vmatprep.subr.mxu0 0.0
    %786 = vmatpush1.msra.mxu0 %v561
    %787 = vmatprep.subr.mxu0 0.0
    %788 = vmatpush1.msra.mxu0 %v562
    %789 = vmatprep.subr.mxu0 0.0
    %790 = vmatpush1.msra.mxu0 %v563
    %791 = vmatprep.subr.mxu0 0.0
    %792 = vmatpush1.msra.mxu0 %v564
    %793 = vmatprep.subr.mxu0 0.0
    %794 = vmatpush1.msra.mxu0 %v565
    %795 = vmatprep.subr.mxu0 0.0
    %796 = vmatpush1.msra.mxu0 %v566
    %797 = vmatprep.subr.mxu0 0.0
    %798 = vmatpush1.msra.mxu0 %v567
    %799 = vmatprep.subr.mxu0 0.0
    %800 = vmatpush1.msra.mxu0 %v568
    %801 = vmatprep.subr.mxu0 0.0
    %802 = vmatpush1.msra.mxu0 %v569
    %803 = vmatprep.subr.mxu0 0.0
    %804 = vmatpush1.msra.mxu0 %v570
    %805 = vmatprep.subr.mxu0 0.0
    %806 = vmatpush1.msra.mxu0 %v571
    %807 = vmatprep.subr.mxu0 0.0
    %808 = vmatpush1.msra.mxu0 %v572
    %809 = vmatprep.subr.mxu0 0.0
    %810 = vmatpush1.msra.mxu0 %v573
    %811 = vmatprep.subr.mxu0 0.0
    %812 = vmatpush1.msra.mxu0 %v574
    %813 = vmatprep.subr.mxu0 0.0
    %814 = vmatpush1.msra.mxu0 %v575
    %815 = vmatprep.subr.mxu0 0.0
    %816 = vmatpush1.msra.mxu0 %v576
    %817 = vmatprep.subr.mxu0 0.0
    %818 = vmatpush1.msra.mxu0 %v577
    %819 = vmatprep.subr.mxu0 0.0
    %820 = vmatpush1.msra.mxu0 %v578
    %821 = vmatprep.subr.mxu0 0.0
    %822 = vmatpush1.msra.mxu0 %v579
    %823 = vmatprep.mubr.f32.mxu0 %v481
    %824 = vmatmul.mubr.f32.gmra.mrb[0].mxu0 %v480
    %v825 = vpop.f32.mrb[0].mxu0
    %v826 = vadd.f32 %v756, %v825
    %v827 = vpop.f32.mrb[0].mxu0
    %828 = vdwg.mxu0
    %829 = vmatprep.subr.mxu0 0.0
    %830 = vmatpush1.msra.mxu0 %v580
    %831 = vmatprep.subr.mxu0 0.0
    %832 = vmatpush1.msra.mxu0 %v581
    %833 = vmatprep.subr.mxu0 0.0
    %834 = vmatpush1.msra.mxu0 %v582
    %835 = vmatprep.subr.mxu0 0.0
    %836 = vmatpush1.msra.mxu0 %v583
    %837 = vmatprep.subr.mxu0 0.0
    %838 = vmatpush1.msra.mxu0 %v584
    %839 = vmatprep.subr.mxu0 0.0
    %840 = vmatpush1.msra.mxu0 %v585
    %841 = vmatprep.subr.mxu0 0.0
    %842 = vmatpush1.msra.mxu0 %v586
    %843 = vmatprep.subr.mxu0 0.0
    %844 = vmatpush1.msra.mxu0 %v587
    %845 = vmatprep.subr.mxu0 0.0
    %846 = vmatpush1.msra.mxu0 %v588
    %847 = vmatprep.subr.mxu0 0.0
    %848 = vmatpush1.msra.mxu0 %v589
    %849 = vmatprep.subr.mxu0 0.0
    %850 = vmatpush1.msra.mxu0 %v590
    %851 = vmatprep.subr.mxu0 0.0
    %852 = vmatpush1.msra.mxu0 %v591
    %853 = vmatprep.subr.mxu0 0.0
    %854 = vmatpush1.msra.mxu0 %v592
    %855 = vmatprep.subr.mxu0 0.0
    %856 = vmatpush1.msra.mxu0 %v593
    %857 = vmatprep.subr.mxu0 0.0
    %858 = vmatpush1.msra.mxu0 %v594
    %859 = vmatprep.subr.mxu0 0.0
    %860 = vmatpush1.msra.mxu0 %v595
    %861 = vmatprep.subr.mxu0 0.0
    %862 = vmatpush1.msra.mxu0 %v596
    %863 = vmatprep.subr.mxu0 0.0
    %864 = vmatpush1.msra.mxu0 %v597
    %865 = vmatprep.subr.mxu0 0.0
    %866 = vmatpush1.msra.mxu0 %v598
    %867 = vmatprep.subr.mxu0 0.0
    %868 = vmatpush1.msra.mxu0 %v599
    %869 = vmatprep.subr.mxu0 0.0
    %870 = vmatpush1.msra.mxu0 %v600
    %871 = vmatprep.subr.mxu0 0.0
    %872 = vmatpush1.msra.mxu0 %v601
    %873 = vmatprep.subr.mxu0 0.0
    %874 = vmatpush1.msra.mxu0 %v602
    %875 = vmatprep.subr.mxu0 0.0
    %876 = vmatpush1.msra.mxu0 %v603
    %877 = vmatprep.subr.mxu0 0.0
    %878 = vmatpush1.msra.mxu0 %v604
    %879 = vmatprep.subr.mxu0 0.0
    %880 = vmatpush1.msra.mxu0 %v605
    %881 = vmatprep.subr.mxu0 0.0
    %882 = vmatpush1.msra.mxu0 %v606
    %883 = vmatprep.subr.mxu0 0.0
    %884 = vmatpush1.msra.mxu0 %v607
    %885 = vmatprep.subr.mxu0 0.0
    %886 = vmatpush1.msra.mxu0 %v608
    %887 = vmatprep.subr.mxu0 0.0
    %888 = vmatpush1.msra.mxu0 %v609
    %889 = vmatprep.subr.mxu0 0.0
    %890 = vmatpush1.msra.mxu0 %v610
    %891 = vmatprep.subr.mxu0 0.0
    %892 = vmatpush1.msra.mxu0 %v611
    %893 = vmatprep.mubr.f32.mxu0 %v483
    %894 = vmatmul.mubr.f32.gmra.mrb[0].mxu0 %v482
    %v895 = vpop.f32.mrb[0].mxu0
    %v896 = vadd.f32 %v826, %v895
    %v897 = vpop.f32.mrb[0].mxu0
    %898 = vdwg.mxu0
    %vm899 = vcmask 785408
    %900 = vst.msk [vmem:[#allocation2] sm:$0xff] %vm899, %v896
    // Predicated region
    $region22: #{tpu_custom_call.1} parent=1 // pred_check
      _
    $region23: #{tpu_custom_call.1} parent=1 // pred_check_branch
      %902 = sbr.rel (0) target = $region25
    $region24: #{tpu_custom_call.1} parent=1 // pred_region
      %s904 = ssub.s32 128, 128
      %905 = vsyncadd [#allocation3], %s904
      %s907 = sshll.u32 [#allocation2], 4
      %s908 = int_to_ptr.vmem [resolvable:$true] %s907
      %910 = dma.vmem_to_hbm [thread:$0]  %s908, 128, %s5, [#allocation3]
    $region25: #{tpu_custom_call.1} parent=1 // pred_fallthru
      _
    // Predicated region
    $region26: #{tpu_custom_call.1} parent=1 // pred_check
      _
    $region27: #{tpu_custom_call.1} parent=1 // pred_check_branch
      %912 = sbr.rel (0) target = $region29
    $region28: #{tpu_custom_call.1} parent=1 // pred_region
      %913 = dma.done [#allocation3], 128
    $region29: #{tpu_custom_call.1} parent=1 // pred_fallthru
      _
    %914 = vsyncpa [#allocation3], 1

</llo_original>
